<compile_context>
chip_gen: v7x
topology: tpu7x:2x2x1
jax: 0.10.0
libtpu: 0.0.40
codegen_flags: <defaults>
</compile_context>

<pallas_src>
import functools

import jax
import jax.numpy as jnp
from jax.experimental import pallas as pl
from jax.experimental.pallas import tpu as pltpu

_LANE = 128
_SUBLANE = 8
_NEG_BIG = -1e30  # effectively -inf for the padded logit lanes


def _round_up(x, m):
    return (x + m - 1) // m * m


# Feature-detect `pipeline_mode=pl.Buffered(...)` on BlockSpec (used to
# single-buffer the VMEM-resident weights); fall back gracefully otherwise.
try:
    pl.BlockSpec((8, 128), lambda i: (0, 0), pipeline_mode=pl.Buffered(1))
    _HAS_PIPELINE_MODE = True
except Exception:  # pragma: no cover
    _HAS_PIPELINE_MODE = False


def _resident_spec(shape):
    """BlockSpec for an operand with a constant index_map (VMEM-resident)."""
    idx = lambda i: (0,) * len(shape)
    if _HAS_PIPELINE_MODE:
        return pl.BlockSpec(shape, idx, pipeline_mode=pl.Buffered(1))
    return pl.BlockSpec(shape, idx)


# ---------------------------------------------------------------------------
# Fused kernel: whole network in one body; the layer loop is unrolled at
# trace time (number of RBM layers is a small static constant).
# refs = (w0, b0, w1, b1, ..., [w_fc, b_fc], o_ref)
# ---------------------------------------------------------------------------
def _dbn_kernel(x_ref, *refs, n_layers, out):
    o_ref = refs[-1]
    h = x_ref[...]                                    # bf16 (already cast)
    for l in range(n_layers):
        w_ref = refs[2 * l]
        b_ref = refs[2 * l + 1]
        z = jnp.dot(h.astype(w_ref.dtype), w_ref[...],
                    preferred_element_type=jnp.float32)
        h = jax.nn.sigmoid(z + b_ref[...])            # f32
    if out:
        w_fc_ref = refs[2 * n_layers]
        b_fc_ref = refs[2 * n_layers + 1]
        # Padded logit lanes carry bias = -1e30 -> excluded from max / sum.
        logits = jnp.dot(h.astype(w_fc_ref.dtype), w_fc_ref[...],
                         preferred_element_type=jnp.float32) + b_fc_ref[...]
        m = jnp.max(logits, axis=-1, keepdims=True)
        shifted = logits - m
        lse = jnp.log(jnp.sum(jnp.exp(shifted), axis=-1, keepdims=True))
        o_ref[...] = shifted - lse
    else:
        o_ref[...] = h


# ---------------------------------------------------------------------------
# Parameter packing (done ONCE): transpose to [K, N], pad each layer's dims
# independently to multiples of 128, store weights in bf16 (f32 biases).
# ---------------------------------------------------------------------------
def pack_dbn_params(params, hidden_units, num_classes,
                    compute_dtype=jnp.bfloat16):
    ws, bs = [], []
    for rbm in params["rbms"]:
        n_hid, n_vis = rbm["W"].shape
        kp, np_ = _round_up(n_vis, _LANE), _round_up(n_hid, _LANE)
        w = jnp.zeros((kp, np_), compute_dtype).at[:n_vis, :n_hid].set(
            rbm["W"].T.astype(compute_dtype))
        b = jnp.zeros((1, np_), jnp.float32).at[0, :n_hid].set(
            rbm["h_bias"].astype(jnp.float32))
        ws.append(w)
        bs.append(b)

    n_cls, n_hid_last = params["fc"]["W"].shape
    kp, cp = _round_up(n_hid_last, _LANE), _round_up(num_classes, _LANE)
    w_fc = jnp.zeros((kp, cp), compute_dtype).at[:n_hid_last, :n_cls].set(
        params["fc"]["W"].T.astype(compute_dtype))
    b_fc = jnp.full((1, cp), _NEG_BIG, jnp.float32).at[0, :n_cls].set(
        params["fc"]["b"].astype(jnp.float32))

    arrays = {"w_rbm": tuple(ws), "b_rbm": tuple(bs), "w_fc": w_fc, "b_fc": b_fc}
    meta = {"n_in": hidden_units[0], "n_feat": hidden_units[-1],
            "n_cls": num_classes}
    return arrays, meta


# ---------------------------------------------------------------------------
# End-to-end jitted forward (one pallas_call).
# ---------------------------------------------------------------------------
@functools.partial(jax.jit, static_argnames=("n_feat", "n_cls", "out"))
def _dbn_forward_impl(ws, bs, w_fc, b_fc, x, *, n_feat, n_cls, out):
    B, n_in = x.shape
    n_layers = len(ws)
    compute_dtype = ws[0].dtype
    itemsize = jnp.dtype(compute_dtype).itemsize
    k0 = ws[0].shape[0]                               # padded input width
    out_w = w_fc.shape[1] if out else ws[-1].shape[1]

    # Batch tiling: guarantee >= 2 grid steps for moderate batches (v7x uses
    # both TensorCores via "parallel"); 256-row tiles for large batches.
    if B >= 16:
        b_tile = min(256, max(_SUBLANE, _round_up(-(-B // 2), _SUBLANE)))
    else:
        b_tile = max(_SUBLANE, _round_up(B, _SUBLANE))
    B_pad = _round_up(B, b_tile)
    grid = (B_pad // b_tile,)

    # Pad input only to (B_pad, k0); cast to bf16 for the MXU.
    x_pad = jnp.pad(x.astype(compute_dtype), ((0, B_pad - B), (0, k0 - n_in)))

    in_specs = [pl.BlockSpec((b_tile, k0), lambda i: (i, 0))]
    operands = [x_pad]
    for w, b in zip(ws, bs):
        in_specs += [_resident_spec(w.shape), _resident_spec(b.shape)]
        operands += [w, b]
    if out:
        in_specs += [_resident_spec(w_fc.shape), _resident_spec(b_fc.shape)]
        operands += [w_fc, b_fc]
    o_spec = pl.BlockSpec((b_tile, out_w), lambda i: (i, 0))

    # VMEM budget: single-buffered resident weights + double-buffered x/out
    # tiles + activation headroom.  >= 32 MiB (lifts v5e default), <= 64 MiB.
    weight_bytes = sum(int(a.size) * a.dtype.itemsize for a in operands[1:])
    max_w = max([w.shape[1] for w in ws] + ([w_fc.shape[1]] if out else []))
    needed = (weight_bytes
              + 2 * b_tile * k0 * itemsize
              + 2 * b_tile * out_w * 4
              + 2 * b_tile * max_w * 4)
    vmem_limit = int(min(max(needed + (4 << 20), 32 << 20), 64 << 20))

    all_w = list(ws) + ([w_fc] if out else [])
    flops = 2 * B_pad * sum(w.shape[0] * w.shape[1] for w in all_w)
    transc = B_pad * (sum(w.shape[1] for w in ws) + (w_fc.shape[1] if out else 0))
    bytes_accessed = B_pad * k0 * itemsize + weight_bytes + B_pad * out_w * 4
    ce = pl.CostEstimate(flops=int(flops), transcendentals=int(transc),
                         bytes_accessed=int(bytes_accessed))

    kernel = functools.partial(_dbn_kernel, n_layers=n_layers, out=out)
    y_pad = pl.pallas_call(
        kernel,
        out_shape=jax.ShapeDtypeStruct((B_pad, out_w), jnp.float32),
        grid=grid,
        in_specs=in_specs,
        out_specs=o_spec,
        compiler_params=pltpu.CompilerParams(
            dimension_semantics=("parallel",),
            vmem_limit_bytes=vmem_limit),
        cost_estimate=ce,
    )(*operands)

    return y_pad[:B, :n_cls] if out else y_pad[:B, :n_feat]


def dbn_forward(packed_arrays, packed_meta, v, out=False):
    return _dbn_forward_impl(
        packed_arrays["w_rbm"], packed_arrays["b_rbm"],
        packed_arrays["w_fc"], packed_arrays["b_fc"], v,
        n_feat=packed_meta["n_feat"], n_cls=packed_meta["n_cls"], out=out)


# ---------------------------------------------------------------------------
# Raw (torch-convention) parameter init + pure-JAX reference.
# ---------------------------------------------------------------------------
def xavier_uniform(key, fan_out, fan_in, gain=1.0):
    limit = gain * jnp.sqrt(6.0 / (fan_in + fan_out))
    return jax.random.uniform(key, (fan_out, fan_in), jnp.float32, -limit, limit)


def init_dbn_params(key, hidden_units, num_classes):
    params = {"rbms": [], "fc": None}
    for i in range(1, len(hidden_units)):
        key, kw, kb = jax.random.split(key, 3)
        n_vis, n_hid = hidden_units[i - 1], hidden_units[i]
        W = xavier_uniform(kw, n_hid, n_vis)                   # [n_hid, n_vis]
        hb = 0.01 * jax.random.normal(kb, (n_hid,), jnp.float32)
        params["rbms"].append({"W": W, "h_bias": hb})
    key, kw, kb = jax.random.split(key, 3)
    Wfc = xavier_uniform(kw, num_classes, hidden_units[-1], gain=1.0)
    bfc = 0.01 * jax.random.normal(kb, (num_classes,), jnp.float32)
    params["fc"] = {"W": Wfc, "b": bfc}
    return params


def dbn_forward_ref(params, v, out=False):
    h = v
    for rbm in params["rbms"]:
        h = jax.nn.sigmoid(h @ rbm["W"].T + rbm["h_bias"])
    if out:
        logits = h @ params["fc"]["W"].T + params["fc"]["b"]
        h = jax.nn.log_softmax(logits, axis=1)
    return h


# ---------------------------------------------------------------------------
if __name__ == "__main__":
    key = jax.random.PRNGKey(0)

    hidden_units = [64, 48, 32]   # input dim 64, two RBM layers -> 48 -> 32
    num_classes = 10
    batch = 8

    key, kp, kx = jax.random.split(key, 3)
    params = init_dbn_params(kp, hidden_units, num_classes)
    x = jax.random.normal(kx, (batch, hidden_units[0]), jnp.float32)

    # Pack (transpose + per-layer lane-pad + bf16) ONCE.
    packed_arrays, packed_meta = pack_dbn_params(params, hidden_units, num_classes)

    # Feature-extraction path (out=False) and classification path (out=True).
    feats = dbn_forward(packed_arrays, packed_meta, x, out=False)
    logp = dbn_forward(packed_arrays, packed_meta, x, out=True)
    jax.block_until_ready(feats)
    jax.block_until_ready(logp)

    # Sanity check against pure-JAX f32 reference (bf16 weights/activations
    # with f32 accumulate -> ~1e-2 tolerance).
    feats_ref = dbn_forward_ref(params, x, out=False)
    logp_ref = dbn_forward_ref(params, x, out=True)
    assert feats.shape == (batch, hidden_units[-1])
    assert logp.shape == (batch, num_classes)
    assert jnp.allclose(feats, feats_ref, atol=2e-2, rtol=2e-2)
    assert jnp.allclose(logp, logp_ref, atol=3e-2, rtol=3e-2)

    print("KERNEL_OK")
</pallas_src>

<mosaic_0001>
module attributes {stable_mosaic.version = 11 : i64} {
  func.func @_dbn_kernel(%arg0: i32, %arg1: memref<8x128xbf16, #tpu.memory_space<vmem>>, %arg2: memref<128x128xbf16, #tpu.memory_space<vmem>>, %arg3: memref<1x128xf32, #tpu.memory_space<vmem>>, %arg4: memref<128x128xbf16, #tpu.memory_space<vmem>>, %arg5: memref<1x128xf32, #tpu.memory_space<vmem>>, %arg6: memref<8x128xf32, #tpu.memory_space<vmem>>) attributes {dimension_semantics = [#tpu.dimension_semantics<parallel>], iteration_bounds = array<i64: 1>, scalar_prefetch = 0 : i64, scratch_operands = 0 : i64, tpu.core_type = #tpu.core_type<tc>, window_params = [{transform_indices = @transform_0, window_bounds = array<i64: 8, 128>}, {pipeline_mode = #tpu.pipeline_mode<synchronous>, transform_indices = @transform_1, window_bounds = array<i64: 128, 128>}, {pipeline_mode = #tpu.pipeline_mode<synchronous>, transform_indices = @transform_2, window_bounds = array<i64: 1, 128>}, {pipeline_mode = #tpu.pipeline_mode<synchronous>, transform_indices = @transform_3, window_bounds = array<i64: 128, 128>}, {pipeline_mode = #tpu.pipeline_mode<synchronous>, transform_indices = @transform_4, window_bounds = array<i64: 1, 128>}, {transform_indices = @transform_5, window_bounds = array<i64: 8, 128>}]} {
    %c0 = arith.constant 0 : index
    %c0_0 = arith.constant 0 : index
    %0 = vector.load %arg1[%c0, %c0_0] : memref<8x128xbf16, #tpu.memory_space<vmem>>, vector<8x128xbf16>
    %c0_1 = arith.constant 0 : index
    %c0_2 = arith.constant 0 : index
    %1 = vector.load %arg2[%c0_1, %c0_2] : memref<128x128xbf16, #tpu.memory_space<vmem>>, vector<128x128xbf16>
    %cst = arith.constant dense<0.000000e+00> : vector<8x128xf32>
    %2 = tpu.matmul %0, %1, %cst {dimension_numbers = #tpu.dot_dimension_numbers<[1], [0], [0], [1], [0, 0, 1, 1], [], []>} : vector<8x128xbf16>, vector<128x128xbf16>, vector<8x128xf32> -> vector<8x128xf32>
    %c0_3 = arith.constant 0 : index
    %c0_4 = arith.constant 0 : index
    %3 = vector.load %arg3[%c0_3, %c0_4] : memref<1x128xf32, #tpu.memory_space<vmem>>, vector<1x128xf32>
    %4 = vector.broadcast %3 : vector<1x128xf32> to vector<8x128xf32>
    %5 = arith.addf %2, %4 : vector<8x128xf32>
    %6 = arith.negf %5 : vector<8x128xf32>
    %7 = math.exp %6 : vector<8x128xf32>
    %cst_5 = arith.constant 1.000000e+00 : f32
    %8 = vector.broadcast %cst_5 : f32 to vector<8x128xf32>
    %9 = arith.addf %8, %7 : vector<8x128xf32>
    %10 = arith.divf %8, %9 : vector<8x128xf32>
    %11 = arith.truncf %10 : vector<8x128xf32> to vector<8x128xbf16>
    %c0_6 = arith.constant 0 : index
    %c0_7 = arith.constant 0 : index
    %12 = vector.load %arg4[%c0_6, %c0_7] : memref<128x128xbf16, #tpu.memory_space<vmem>>, vector<128x128xbf16>
    %cst_8 = arith.constant dense<0.000000e+00> : vector<8x128xf32>
    %13 = tpu.matmul %11, %12, %cst_8 {dimension_numbers = #tpu.dot_dimension_numbers<[1], [0], [0], [1], [0, 0, 1, 1], [], []>} : vector<8x128xbf16>, vector<128x128xbf16>, vector<8x128xf32> -> vector<8x128xf32>
    %c0_9 = arith.constant 0 : index
    %c0_10 = arith.constant 0 : index
    %14 = vector.load %arg5[%c0_9, %c0_10] : memref<1x128xf32, #tpu.memory_space<vmem>>, vector<1x128xf32>
    %15 = vector.broadcast %14 : vector<1x128xf32> to vector<8x128xf32>
    %16 = arith.addf %13, %15 : vector<8x128xf32>
    %17 = arith.negf %16 : vector<8x128xf32>
    %18 = math.exp %17 : vector<8x128xf32>
    %cst_11 = arith.constant 1.000000e+00 : f32
    %19 = vector.broadcast %cst_11 : f32 to vector<8x128xf32>
    %20 = arith.addf %19, %18 : vector<8x128xf32>
    %21 = arith.divf %19, %20 : vector<8x128xf32>
    %c0_12 = arith.constant 0 : index
    %c0_13 = arith.constant 0 : index
    %22 = vector.load %arg6[%c0_12, %c0_13] : memref<8x128xf32, #tpu.memory_space<vmem>>, vector<8x128xf32>
    tpu.vector_store %arg6[%c0_12, %c0_13], %21 {strides = array<i32>} : memref<8x128xf32, #tpu.memory_space<vmem>>, vector<8x128xf32>,
    return
  }
  func.func @transform_0(%arg0: i32) -> (i32, i32) {
    %c0_i32 = arith.constant 0 : i32
    %c0_i32_0 = arith.constant 0 : i32
    return %arg0, %c0_i32 : i32, i32
  }
  func.func @transform_1(%arg0: i32) -> (i32, i32) {
    %c0_i32 = arith.constant 0 : i32
    %c0_i32_0 = arith.constant 0 : i32
    %c0_i32_1 = arith.constant 0 : i32
    return %c0_i32, %c0_i32_0 : i32, i32
  }
  func.func @transform_2(%arg0: i32) -> (i32, i32) {
    %c0_i32 = arith.constant 0 : i32
    %c0_i32_0 = arith.constant 0 : i32
    %c0_i32_1 = arith.constant 0 : i32
    return %c0_i32, %c0_i32_0 : i32, i32
  }
  func.func @transform_3(%arg0: i32) -> (i32, i32) {
    %c0_i32 = arith.constant 0 : i32
    %c0_i32_0 = arith.constant 0 : i32
    %c0_i32_1 = arith.constant 0 : i32
    return %c0_i32, %c0_i32_0 : i32, i32
  }
  func.func @transform_4(%arg0: i32) -> (i32, i32) {
    %c0_i32 = arith.constant 0 : i32
    %c0_i32_0 = arith.constant 0 : i32
    %c0_i32_1 = arith.constant 0 : i32
    return %c0_i32, %c0_i32_0 : i32, i32
  }
  func.func @transform_5(%arg0: i32) -> (i32, i32) {
    %c0_i32 = arith.constant 0 : i32
    %c0_i32_0 = arith.constant 0 : i32
    return %arg0, %c0_i32 : i32, i32
  }
}

</mosaic_0001>

<llo_original>
// kernel: _dbn_forward_impl.1
$region0: #{_dbn_forward_impl.1}
  #allocation0 [shape = 'u32[]', space=smem, size = 0x4, offset = 0x4, fixed_abs, tag = 'smem constant byte address 0x4 - core index']
  #allocation1 [shape = 'u32[144,128]{1,0:T(1,128)}', space=vmem, size = 0x12000, scoped, tag = 'internal scratch']
  %s0 = inlined_call_operand.vmem [shape: bf16[8,128], index: 0, kind: input, shape index: {}]
  %s1 = inlined_call_operand.hbm [shape: bf16[128,128], index: 1, kind: input, shape index: {}]
  %s2 = inlined_call_operand.vmem [shape: f32[1,128], index: 2, kind: input, shape index: {}]
  %s3 = inlined_call_operand.hbm [shape: bf16[128,128], index: 3, kind: input, shape index: {}]
  %s4 = inlined_call_operand.vmem [shape: f32[1,128], index: 4, kind: input, shape index: {}]
  %s5 = inlined_call_operand.hbm [shape: f32[8,128], index: 5, kind: output, shape index: {}]
  %s6 = sld [smem:[#allocation0]]
  $region38: #{_dbn_forward_impl.1} parent=0
    _
  %s8 = ssub.s32 1, %s6
  %s9 = scalar_select 0, %s8, %s6
  $region1: #{_dbn_forward_impl.1} parent=0
    #allocation2 [shape = 'u8[32768]{0}', space=vmem, size = 0x8000, scoped, tag = 'input window, operand 1, single buffered']
    #allocation3 [shape = 's32[1]{0}', space=sflag, size = 0x4, scoped, tag = 'scoped memory for _dbn_forward_impl.1']
    #allocation4 [shape = 's32[1]{0}', space=sflag, size = 0x4, scoped, tag = 'scoped memory for _dbn_forward_impl.1']
    #allocation5 [shape = 'u8[32768]{0}', space=vmem, size = 0x8000, scoped, tag = 'input window, operand 3, single buffered']
    #allocation6 [shape = 's32[1]{0}', space=sflag, size = 0x4, scoped, tag = 'scoped memory for _dbn_forward_impl.1']
    #allocation7 [shape = 'u8[4096]{0}', space=vmem, size = 0x1000, scoped, tag = 'output window, operand 0, single buffered']
    %10 = vsyncpa [#allocation3], 0
    %11 = vsyncpa [#allocation6], 0
    %12 = vsyncpa [#allocation4], 0
    // Predicated region
    $region2: #{_dbn_forward_impl.1} parent=1 // pred_check
      _
    $region3: #{_dbn_forward_impl.1} parent=1 // pred_check_branch
      %14 = sbr.rel (0) target = $region5
    $region4: #{_dbn_forward_impl.1} parent=1 // pred_region
      _
    $region5: #{_dbn_forward_impl.1} parent=1 // pred_fallthru
      _
    // Predicated region
    $region6: #{_dbn_forward_impl.1} parent=1 // pred_check
      _
    $region7: #{_dbn_forward_impl.1} parent=1 // pred_check_branch
      %16 = sbr.rel (0) target = $region9
    $region8: #{_dbn_forward_impl.1} parent=1 // pred_region
      %s18 = ssub.s32 1024, 1024
      %19 = vsyncadd [#allocation3], %s18
      %s20 = sshll.u32 [#allocation2], 4
      %s21 = int_to_ptr.vmem [resolvable:$true] %s20
      %26 = dma.hbm_to_vmem [thread:$0]  %s1, 1024, %s21, [#allocation3], 64, 64, 4
    $region9: #{_dbn_forward_impl.1} parent=1 // pred_fallthru
      _
    // Predicated region
    $region10: #{_dbn_forward_impl.1} parent=1 // pred_check
      _
    $region11: #{_dbn_forward_impl.1} parent=1 // pred_check_branch
      %28 = sbr.rel (0) target = $region13
    $region12: #{_dbn_forward_impl.1} parent=1 // pred_region
      _
    $region13: #{_dbn_forward_impl.1} parent=1 // pred_fallthru
      _
    // Predicated region
    $region14: #{_dbn_forward_impl.1} parent=1 // pred_check
      _
    $region15: #{_dbn_forward_impl.1} parent=1 // pred_check_branch
      %30 = sbr.rel (0) target = $region17
    $region16: #{_dbn_forward_impl.1} parent=1 // pred_region
      %s32 = ssub.s32 1024, 1024
      %33 = vsyncadd [#allocation6], %s32
      %s34 = sshll.u32 [#allocation5], 4
      %s35 = int_to_ptr.vmem [resolvable:$true] %s34
      %40 = dma.hbm_to_vmem [thread:$0]  %s3, 1024, %s35, [#allocation6], 64, 64, 4
    $region17: #{_dbn_forward_impl.1} parent=1 // pred_fallthru
      _
    // Predicated region
    $region18: #{_dbn_forward_impl.1} parent=1 // pred_check
      _
    $region19: #{_dbn_forward_impl.1} parent=1 // pred_check_branch
      %42 = sbr.rel (0) target = $region21
    $region20: #{_dbn_forward_impl.1} parent=1 // pred_region
      _
    $region21: #{_dbn_forward_impl.1} parent=1 // pred_fallthru
      _
    // Predicated region
    $region22: #{_dbn_forward_impl.1} parent=1 // pred_check
      _
    $region23: #{_dbn_forward_impl.1} parent=1 // pred_check_branch
      %44 = sbr.rel (0) target = $region25
    $region24: #{_dbn_forward_impl.1} parent=1 // pred_region
      %45 = dma.done [#allocation3], 1024
    $region25: #{_dbn_forward_impl.1} parent=1 // pred_fallthru
      _
    // Predicated region
    $region26: #{_dbn_forward_impl.1} parent=1 // pred_check
      _
    $region27: #{_dbn_forward_impl.1} parent=1 // pred_check_branch
      %47 = sbr.rel (0) target = $region29
    $region28: #{_dbn_forward_impl.1} parent=1 // pred_region
      %48 = dma.done [#allocation6], 1024
    $region29: #{_dbn_forward_impl.1} parent=1 // pred_fallthru
      _
    %v50 = vld [vmem:[%s0] sm:$0xf]
    %v51 = vld [vmem:[#allocation2] sm:$0xf]
    %v52 = vld [vmem:[#allocation2 + $0x4] sm:$0xf]
    %v53 = vld [vmem:[#allocation2 + $0x8] sm:$0xf]
    %v54 = vld [vmem:[#allocation2 + $0xc] sm:$0xf]
    %v55 = vld [vmem:[#allocation2 + $0x10] sm:$0xf]
    %v56 = vld [vmem:[#allocation2 + $0x14] sm:$0xf]
    %v57 = vld [vmem:[#allocation2 + $0x18] sm:$0xf]
    %v58 = vld [vmem:[#allocation2 + $0x1c] sm:$0xf]
    %v59 = vld [vmem:[#allocation2 + $0x20] sm:$0xf]
    %v60 = vld [vmem:[#allocation2 + $0x24] sm:$0xf]
    %v61 = vld [vmem:[#allocation2 + $0x28] sm:$0xf]
    %v62 = vld [vmem:[#allocation2 + $0x2c] sm:$0xf]
    %v63 = vld [vmem:[#allocation2 + $0x30] sm:$0xf]
    %v64 = vld [vmem:[#allocation2 + $0x34] sm:$0xf]
    %v65 = vld [vmem:[#allocation2 + $0x38] sm:$0xf]
    %v66 = vld [vmem:[#allocation2 + $0x3c] sm:$0xf]
    %v67 = vld [vmem:[%s2] sm:$0x1]
    %v69 = vlaneseq
    %v70 = vshrl.u32 %v69, 7
    %v71 = vsub.s32 0, %v70
    %v72 = vrot.slane %v67, %v71
    %v90 = vunpack.c.l.b16 %v51
    %v91 = vunpack.c.l.b16 %v52
    %v92 = vunpack.c.l.b16 %v53
    %v93 = vunpack.c.l.b16 %v54
    %v94 = vunpack.c.l.b16 %v55
    %v95 = vunpack.c.l.b16 %v56
    %v96 = vunpack.c.l.b16 %v57
    %v97 = vunpack.c.l.b16 %v58
    %v98 = vunpack.c.l.b16 %v59
    %v99 = vunpack.c.l.b16 %v60
    %v100 = vunpack.c.l.b16 %v61
    %v101 = vunpack.c.l.b16 %v62
    %v102 = vunpack.c.l.b16 %v63
    %v103 = vunpack.c.l.b16 %v64
    %v104 = vunpack.c.l.b16 %v65
    %v105 = vunpack.c.l.b16 %v66
    %v106 = vpack.c.b16 %v91, %v90
    %v107 = vpack.c.b16 %v93, %v92
    %v108 = vpack.c.b16 %v95, %v94
    %v109 = vpack.c.b16 %v97, %v96
    %v110 = vpack.c.b16 %v99, %v98
    %v111 = vpack.c.b16 %v101, %v100
    %v112 = vpack.c.b16 %v103, %v102
    %v113 = vpack.c.b16 %v105, %v104
    %122 = vmatprep.subr.bf16.mxu0 0
    %123 = vmatpush1.bf16.msra.mxu0 %v106
    %124 = vmatprep.subr.bf16.mxu0 0
    %125 = vmatpush1.bf16.msra.mxu0 %v107
    %126 = vmatprep.subr.bf16.mxu0 0
    %127 = vmatpush1.bf16.msra.mxu0 %v108
    %128 = vmatprep.subr.bf16.mxu0 0
    %129 = vmatpush1.bf16.msra.mxu0 %v109
    %130 = vmatprep.subr.bf16.mxu0 0
    %131 = vmatpush1.bf16.msra.mxu0 %v110
    %132 = vmatprep.subr.bf16.mxu0 0
    %133 = vmatpush1.bf16.msra.mxu0 %v111
    %134 = vmatprep.subr.bf16.mxu0 0
    %135 = vmatpush1.bf16.msra.mxu0 %v112
    %136 = vmatprep.subr.bf16.mxu0 0
    %137 = vmatpush1.bf16.msra.mxu0 %v113
    %138 = vmatprep.subr.bf16.mxu0 0
    %139 = vmatpush1.bf16.msra.mxu0 0
    %140 = vmatprep.subr.bf16.mxu0 0
    %141 = vmatpush1.bf16.msra.mxu0 0
    %142 = vmatprep.subr.bf16.mxu0 0
    %143 = vmatpush1.bf16.msra.mxu0 0
    %144 = vmatprep.subr.bf16.mxu0 0
    %145 = vmatpush1.bf16.msra.mxu0 0
    %146 = vmatprep.subr.bf16.mxu0 0
    %147 = vmatpush1.bf16.msra.mxu0 0
    %148 = vmatprep.subr.bf16.mxu0 0
    %149 = vmatpush1.bf16.msra.mxu0 0
    %150 = vmatprep.subr.bf16.mxu0 0
    %151 = vmatpush1.bf16.msra.mxu0 0
    %152 = vmatprep.subr.bf16.mxu0 0
    %153 = vmatpush1.bf16.msra.mxu0 0
    %154 = vmatprep.mubr.bf16.mxu0 0
    %155 = vmatmul.mubr.bf16.gmra.mrb[0].mxu0 %v50
    %v156 = vpop.f32.mrb[0].mxu0
    %v157 = vadd.f32 %v72, %v156
    %v158 = vpop.f32.mrb[0].mxu0
    %v159 = vpop.f32.mrb[0].mxu0
    %v160 = vpop.f32.mrb[0].mxu0
    %161 = vdwg.mxu0
    %v162 = vxor.u32 %v157, 2147483648
    %v163 = vmul.f32 %v162, 1.442695
    %v164 = vpow.pop %v163
    %v165 = vadd.f32 %v164, 1.0
    %v166 = vrcp.pop %v165
    %v167 = vmul.f32 1.0, %v166
    %v168 = vpack.c.bf16 %v167, %v167
    %v169 = vld [vmem:[#allocation5] sm:$0xf]
    %v170 = vld [vmem:[#allocation5 + $0x4] sm:$0xf]
    %v171 = vld [vmem:[#allocation5 + $0x8] sm:$0xf]
    %v172 = vld [vmem:[#allocation5 + $0xc] sm:$0xf]
    %v173 = vld [vmem:[#allocation5 + $0x10] sm:$0xf]
    %v174 = vld [vmem:[#allocation5 + $0x14] sm:$0xf]
    %v175 = vld [vmem:[#allocation5 + $0x18] sm:$0xf]
    %v176 = vld [vmem:[#allocation5 + $0x1c] sm:$0xf]
    %v177 = vld [vmem:[#allocation5 + $0x20] sm:$0xf]
    %v178 = vld [vmem:[#allocation5 + $0x24] sm:$0xf]
    %v179 = vld [vmem:[#allocation5 + $0x28] sm:$0xf]
    %v180 = vld [vmem:[#allocation5 + $0x2c] sm:$0xf]
    %v181 = vld [vmem:[#allocation5 + $0x30] sm:$0xf]
    %v182 = vld [vmem:[#allocation5 + $0x34] sm:$0xf]
    %v183 = vld [vmem:[#allocation5 + $0x38] sm:$0xf]
    %v184 = vld [vmem:[#allocation5 + $0x3c] sm:$0xf]
    %v185 = vld [vmem:[%s4] sm:$0x1]
    %v187 = vlaneseq
    %v188 = vshrl.u32 %v187, 7
    %v189 = vsub.s32 0, %v188
    %v190 = vrot.slane %v185, %v189
    %v208 = vunpack.c.l.b16 %v169
    %v209 = vunpack.c.l.b16 %v170
    %v210 = vunpack.c.l.b16 %v171
    %v211 = vunpack.c.l.b16 %v172
    %v212 = vunpack.c.l.b16 %v173
    %v213 = vunpack.c.l.b16 %v174
    %v214 = vunpack.c.l.b16 %v175
    %v215 = vunpack.c.l.b16 %v176
    %v216 = vunpack.c.l.b16 %v177
    %v217 = vunpack.c.l.b16 %v178
    %v218 = vunpack.c.l.b16 %v179
    %v219 = vunpack.c.l.b16 %v180
    %v220 = vunpack.c.l.b16 %v181
    %v221 = vunpack.c.l.b16 %v182
    %v222 = vunpack.c.l.b16 %v183
    %v223 = vunpack.c.l.b16 %v184
    %v224 = vpack.c.b16 %v209, %v208
    %v225 = vpack.c.b16 %v211, %v210
    %v226 = vpack.c.b16 %v213, %v212
    %v227 = vpack.c.b16 %v215, %v214
    %v228 = vpack.c.b16 %v217, %v216
    %v229 = vpack.c.b16 %v219, %v218
    %v230 = vpack.c.b16 %v221, %v220
    %v231 = vpack.c.b16 %v223, %v222
    %240 = vmatprep.subr.bf16.mxu0 0
    %241 = vmatpush1.bf16.msra.mxu0 %v224
    %242 = vmatprep.subr.bf16.mxu0 0
    %243 = vmatpush1.bf16.msra.mxu0 %v225
    %244 = vmatprep.subr.bf16.mxu0 0
    %245 = vmatpush1.bf16.msra.mxu0 %v226
    %246 = vmatprep.subr.bf16.mxu0 0
    %247 = vmatpush1.bf16.msra.mxu0 %v227
    %248 = vmatprep.subr.bf16.mxu0 0
    %249 = vmatpush1.bf16.msra.mxu0 %v228
    %250 = vmatprep.subr.bf16.mxu0 0
    %251 = vmatpush1.bf16.msra.mxu0 %v229
    %252 = vmatprep.subr.bf16.mxu0 0
    %253 = vmatpush1.bf16.msra.mxu0 %v230
    %254 = vmatprep.subr.bf16.mxu0 0
    %255 = vmatpush1.bf16.msra.mxu0 %v231
    %256 = vmatprep.subr.bf16.mxu0 0
    %257 = vmatpush1.bf16.msra.mxu0 0
    %258 = vmatprep.subr.bf16.mxu0 0
    %259 = vmatpush1.bf16.msra.mxu0 0
    %260 = vmatprep.subr.bf16.mxu0 0
    %261 = vmatpush1.bf16.msra.mxu0 0
    %262 = vmatprep.subr.bf16.mxu0 0
    %263 = vmatpush1.bf16.msra.mxu0 0
    %264 = vmatprep.subr.bf16.mxu0 0
    %265 = vmatpush1.bf16.msra.mxu0 0
    %266 = vmatprep.subr.bf16.mxu0 0
    %267 = vmatpush1.bf16.msra.mxu0 0
    %268 = vmatprep.subr.bf16.mxu0 0
    %269 = vmatpush1.bf16.msra.mxu0 0
    %270 = vmatprep.subr.bf16.mxu0 0
    %271 = vmatpush1.bf16.msra.mxu0 0
    %272 = vmatprep.mubr.bf16.mxu0 0
    %273 = vmatmul.mubr.bf16.gmra.mrb[0].mxu0 %v168
    %v274 = vpop.f32.mrb[0].mxu0
    %v275 = vadd.f32 %v190, %v274
    %v276 = vpop.f32.mrb[0].mxu0
    %v277 = vpop.f32.mrb[0].mxu0
    %v278 = vpop.f32.mrb[0].mxu0
    %279 = vdwg.mxu0
    %v280 = vxor.u32 %v275, 2147483648
    %v281 = vmul.f32 %v280, 1.442695
    %v282 = vpow.pop %v281
    %v283 = vadd.f32 %v282, 1.0
    %v284 = vrcp.pop %v283
    %v285 = vmul.f32 1.0, %v284
    %286 = vst [vmem:[#allocation7] sm:$0xff] %v285
    // Predicated region
    $region30: #{_dbn_forward_impl.1} parent=1 // pred_check
      _
    $region31: #{_dbn_forward_impl.1} parent=1 // pred_check_branch
      %288 = sbr.rel (0) target = $region33
    $region32: #{_dbn_forward_impl.1} parent=1 // pred_region
      %s290 = ssub.s32 128, 128
      %291 = vsyncadd [#allocation4], %s290
      %s293 = sshll.u32 [#allocation7], 4
      %s294 = int_to_ptr.vmem [resolvable:$true] %s293
      %296 = dma.vmem_to_hbm [thread:$0]  %s294, 128, %s5, [#allocation4]
    $region33: #{_dbn_forward_impl.1} parent=1 // pred_fallthru
      _
    // Predicated region
    $region34: #{_dbn_forward_impl.1} parent=1 // pred_check
      _
    $region35: #{_dbn_forward_impl.1} parent=1 // pred_check_branch
      %298 = sbr.rel (0) target = $region37
    $region36: #{_dbn_forward_impl.1} parent=1 // pred_region
      %299 = dma.done [#allocation4], 128
    $region37: #{_dbn_forward_impl.1} parent=1 // pred_fallthru
      _
    %300 = vsyncpa [#allocation3], 1
    %301 = vsyncpa [#allocation6], 1
    %302 = vsyncpa [#allocation4], 1

</llo_original>
